<compile_context>
chip_gen: v7x
topology: tpu7x:2x2x1
jax: 0.10.0
libtpu: 0.0.40
codegen_flags: <defaults>
</compile_context>

<pallas_src>
import functools

import jax
import jax.numpy as jnp
from jax import lax
from jax.experimental import pallas as pl
from jax.experimental.pallas import tpu as pltpu

_LANE = 128


def _round_up(x, m):
    return (x + m - 1) // m * m


def _tstp_kernel(x_ref, mean_ref, std_ref, sum_acc, sq_acc, *,
                 t_true, t_tile, mask_time):
    """One (tR, tT) chunk of the flattened (rows, time) input.

    Accumulates per-row sum / sum-of-squares over the time-tile axis (grid
    axis 1) into lane-dense (tR, 128) f32 scratch, and writes mean / std on
    the last time tile.
    """
    k = pl.program_id(1)

    @pl.when(k == 0)
    def _():
        sum_acc[...] = jnp.zeros_like(sum_acc)
        sq_acc[...] = jnp.zeros_like(sq_acc)

    x = x_ref[...].astype(jnp.float32)                       # (tR, tT)

    if mask_time:
        # Zero out lanes past the true sequence length (also covers garbage
        # read from the partially out-of-bounds edge block).
        valid = t_true - k * t_tile
        col = lax.broadcasted_iota(jnp.int32, x.shape, 1)
        x = jnp.where(col < valid, x, 0.0)

    # Lane-group accumulation: tT -> 128 lanes with cheap VALU adds.  The
    # expensive XLU cross-lane reduce is deferred to the finalize step.
    n_groups = t_tile // _LANE
    s = x[:, 0:_LANE]
    q = s * s
    for g in range(1, n_groups):
        xg = x[:, g * _LANE:(g + 1) * _LANE]
        s = s + xg
        q = q + xg * xg
    sum_acc[...] += s
    sq_acc[...] += q

    @pl.when(k == pl.num_programs(1) - 1)
    def _():
        s_tot = jnp.sum(sum_acc[...], axis=-1, keepdims=True)   # (tR, 1)
        q_tot = jnp.sum(sq_acc[...], axis=-1, keepdims=True)    # (tR, 1)
        mean = s_tot * jnp.float32(1.0 / t_true)
        # Unbiased variance (torch.var default, correction=1).
        if t_true > 1:
            inv_nm1 = jnp.float32(1.0 / (t_true - 1))
        else:
            inv_nm1 = jnp.float32(float("nan"))                  # matches torch (NaN)
        var = (q_tot - s_tot * mean) * inv_nm1
        var = jnp.maximum(var, 0.0)     # guard single-pass cancellation
        std = jnp.sqrt(var + jnp.float32(1e-7))
        mean_ref[...] = mean.astype(mean_ref.dtype)
        std_ref[...] = std.astype(std_ref.dtype)


def tstp_pallas(x, *, tile_rows=512, tile_t=2048):
    """Temporal statistics pooling.  x: (B, F, T) -> (B, 2*F)."""
    B, F, T = x.shape
    R = B * F

    itemsize = jnp.dtype(x.dtype).itemsize
    sub = max(8, 8 * (4 // max(itemsize, 1)))    # sublane multiple: 8 f32, 16 bf16

    # Time tile: lane-aligned multiple of 128, capped at tile_t.
    tT = min(_round_up(tile_t, _LANE), _round_up(T, _LANE))
    grid_k = pl.cdiv(T, tT)
    mask_time = (T % tT) != 0

    # Row tile: sublane-aligned, capped at tile_rows.  Row-overhang blocks are
    # allowed: their garbage stats are clipped on writeback by Pallas.
    tR = _round_up(min(tile_rows, _round_up(R, sub)), sub)
    grid_r = pl.cdiv(R, tR)

    xr = x.reshape(R, T)     # contiguous -> free reshape, no HBM copy

    kernel = functools.partial(
        _tstp_kernel, t_true=T, t_tile=tT, mask_time=mask_time)

    mean, std = pl.pallas_call(
        kernel,
        out_shape=(
            jax.ShapeDtypeStruct((R, 1), x.dtype),
            jax.ShapeDtypeStruct((R, 1), x.dtype),
        ),
        grid_spec=pltpu.PrefetchScalarGridSpec(
            num_scalar_prefetch=0,
            grid=(grid_r, grid_k),
            in_specs=[pl.BlockSpec((tR, tT), lambda r, k: (r, k))],
            out_specs=(
                pl.BlockSpec((tR, 1), lambda r, k: (r, 0)),
                pl.BlockSpec((tR, 1), lambda r, k: (r, 0)),
            ),
            scratch_shapes=[
                pltpu.VMEM((tR, _LANE), jnp.float32),
                pltpu.VMEM((tR, _LANE), jnp.float32),
            ],
        ),
        compiler_params=pltpu.CompilerParams(
            dimension_semantics=("parallel", "arbitrary"),
            vmem_limit_bytes=32 * 1024 * 1024,
        ),
    )(xr)

    mean = mean[:, 0].reshape(B, F)
    std = std[:, 0].reshape(B, F)
    return jnp.concatenate([mean, std], axis=1)


def tstp_reference(x):
    """Pure-JAX reference mirroring the PyTorch forward."""
    mean = jnp.mean(x, axis=-1)
    var = jnp.var(x, axis=-1, ddof=1)            # unbiased, like torch.var
    std = jnp.sqrt(var + 1e-7)
    mean = mean.reshape(mean.shape[0], -1)
    std = std.reshape(std.shape[0], -1)
    return jnp.concatenate([mean, std], axis=1)


if __name__ == "__main__":
    key = jax.random.PRNGKey(0)

    # Small shape consistent with the module (batch, feature, time).
    B, F, T = 2, 32, 16
    x_small = jax.random.normal(key, (B, F, T), dtype=jnp.float32)
    out_small = jax.block_until_ready(tstp_pallas(x_small))
    ref_small = tstp_reference(x_small)
    assert out_small.shape == (B, 2 * F), out_small.shape
    assert jnp.allclose(out_small, ref_small, atol=1e-4, rtol=1e-4), \
        "mismatch vs reference (small)"

    # Larger shape: ragged time axis (masked last tile), row overhang block.
    B2, F2, T2 = 2, 33, 2500
    x_big = jax.random.normal(jax.random.PRNGKey(1), (B2, F2, T2),
                              dtype=jnp.float32)
    out_big = jax.block_until_ready(tstp_pallas(x_big))
    ref_big = tstp_reference(x_big)
    assert out_big.shape == (B2, 2 * F2), out_big.shape
    assert jnp.allclose(out_big, ref_big, atol=1e-4, rtol=1e-4), \
        "mismatch vs reference (tiled / masked)"

    # Force small tiles: multiple row tiles AND multiple masked time tiles.
    B3, F3, T3 = 3, 40, 300
    x_t = jax.random.normal(jax.random.PRNGKey(2), (B3, F3, T3),
                            dtype=jnp.float32)
    out_t = jax.block_until_ready(tstp_pallas(x_t, tile_rows=32, tile_t=128))
    ref_t = tstp_reference(x_t)
    assert out_t.shape == (B3, 2 * F3), out_t.shape
    assert jnp.allclose(out_t, ref_t, atol=1e-4, rtol=1e-4), \
        "mismatch vs reference (small tiles)"

    print("KERNEL_OK")
</pallas_src>

<mosaic_0001>
module attributes {stable_mosaic.version = 11 : i64} {
  func.func @_tstp_kernel(%arg0: i32, %arg1: i32, %arg2: memref<64x128xf32, #tpu.memory_space<vmem>>, %arg3: memref<64x1xf32, #tpu.memory_space<vmem>>, %arg4: memref<64x1xf32, #tpu.memory_space<vmem>>, %arg5: memref<64x128xf32, #tpu.memory_space<vmem>>, %arg6: memref<64x128xf32, #tpu.memory_space<vmem>>) attributes {dimension_semantics = [#tpu.dimension_semantics<parallel>, #tpu.dimension_semantics<arbitrary>], iteration_bounds = array<i64: 1, 1>, scalar_prefetch = 0 : i64, scratch_operands = 2 : i64, tpu.core_type = #tpu.core_type<tc>, window_params = [{transform_indices = @transform_0, window_bounds = array<i64: 64, 128>}, {transform_indices = @transform_1, window_bounds = array<i64: 64, 1>}, {transform_indices = @transform_2, window_bounds = array<i64: 64, 1>}]} {
    %c0_i32 = arith.constant 0 : i32
    %0 = arith.cmpi eq, %arg1, %c0_i32 : i32
    %1 = arith.extui %0 : i1 to i32
    %c0_i32_0 = arith.constant 0 : i32
    %2 = arith.cmpi ne, %1, %c0_i32_0 : i32
    scf.if %2 {
      %cst_12 = arith.constant 0.000000e+00 : f32
      %21 = vector.broadcast %cst_12 : f32 to vector<64x128xf32>
      %c0_13 = arith.constant 0 : index
      %c0_14 = arith.constant 0 : index
      %22 = vector.load %arg5[%c0_13, %c0_14] : memref<64x128xf32, #tpu.memory_space<vmem>>, vector<64x128xf32>
      tpu.vector_store %arg5[%c0_13, %c0_14], %21 {strides = array<i32>} : memref<64x128xf32, #tpu.memory_space<vmem>>, vector<64x128xf32>,
      %cst_15 = arith.constant 0.000000e+00 : f32
      %23 = vector.broadcast %cst_15 : f32 to vector<64x128xf32>
      %c0_16 = arith.constant 0 : index
      %c0_17 = arith.constant 0 : index
      %24 = vector.load %arg6[%c0_16, %c0_17] : memref<64x128xf32, #tpu.memory_space<vmem>>, vector<64x128xf32>
      tpu.vector_store %arg6[%c0_16, %c0_17], %23 {strides = array<i32>} : memref<64x128xf32, #tpu.memory_space<vmem>>, vector<64x128xf32>,
    } else {
    }
    %c0 = arith.constant 0 : index
    %c0_1 = arith.constant 0 : index
    %3 = vector.load %arg2[%c0, %c0_1] : memref<64x128xf32, #tpu.memory_space<vmem>>, vector<64x128xf32>
    %c128_i32 = arith.constant 128 : i32
    %4 = arith.muli %arg1, %c128_i32 : i32
    %c16_i32 = arith.constant 16 : i32
    %5 = arith.subi %c16_i32, %4 : i32
    %6 = tpu.iota {dimensions = array<i32: 1>} : vector<64x128xi32>
    %7 = vector.broadcast %5 : i32 to vector<64x128xi32>
    %8 = arith.cmpi slt, %6, %7 : vector<64x128xi32>
    %cst = arith.constant 0.000000e+00 : f32
    %9 = vector.broadcast %cst : f32 to vector<64x128xf32>
    %10 = arith.select %8, %3, %9 : vector<64x128xi1>, vector<64x128xf32>
    %11 = arith.mulf %10, %10 : vector<64x128xf32>
    %c0_2 = arith.constant 0 : index
    %c0_3 = arith.constant 0 : index
    %12 = vector.load %arg5[%c0_2, %c0_3] : memref<64x128xf32, #tpu.memory_space<vmem>>, vector<64x128xf32>
    %13 = arith.addf %12, %10 : vector<64x128xf32>
    %c0_4 = arith.constant 0 : index
    %c0_5 = arith.constant 0 : index
    %14 = vector.load %arg5[%c0_4, %c0_5] : memref<64x128xf32, #tpu.memory_space<vmem>>, vector<64x128xf32>
    tpu.vector_store %arg5[%c0_4, %c0_5], %13 {strides = array<i32>} : memref<64x128xf32, #tpu.memory_space<vmem>>, vector<64x128xf32>,
    %c0_6 = arith.constant 0 : index
    %c0_7 = arith.constant 0 : index
    %15 = vector.load %arg6[%c0_6, %c0_7] : memref<64x128xf32, #tpu.memory_space<vmem>>, vector<64x128xf32>
    %16 = arith.addf %15, %11 : vector<64x128xf32>
    %c0_8 = arith.constant 0 : index
    %c0_9 = arith.constant 0 : index
    %17 = vector.load %arg6[%c0_8, %c0_9] : memref<64x128xf32, #tpu.memory_space<vmem>>, vector<64x128xf32>
    tpu.vector_store %arg6[%c0_8, %c0_9], %16 {strides = array<i32>} : memref<64x128xf32, #tpu.memory_space<vmem>>, vector<64x128xf32>,
    %c0_i32_10 = arith.constant 0 : i32
    %18 = arith.cmpi eq, %arg1, %c0_i32_10 : i32
    %19 = arith.extui %18 : i1 to i32
    %c0_i32_11 = arith.constant 0 : i32
    %20 = arith.cmpi ne, %19, %c0_i32_11 : i32
    scf.if %20 {
      %c0_12 = arith.constant 0 : index
      %c0_13 = arith.constant 0 : index
      %21 = vector.load %arg5[%c0_12, %c0_13] : memref<64x128xf32, #tpu.memory_space<vmem>>, vector<64x128xf32>
      %cst_14 = arith.constant dense<0.000000e+00> : vector<64xf32>
      %22 = vector.multi_reduction <add>, %21, %cst_14 [1] : vector<64x128xf32> to vector<64xf32>
      %23 = vector.shape_cast %22 : vector<64xf32> to vector<64x1xf32>
      %c0_15 = arith.constant 0 : index
      %c0_16 = arith.constant 0 : index
      %24 = vector.load %arg6[%c0_15, %c0_16] : memref<64x128xf32, #tpu.memory_space<vmem>>, vector<64x128xf32>
      %cst_17 = arith.constant dense<0.000000e+00> : vector<64xf32>
      %25 = vector.multi_reduction <add>, %24, %cst_17 [1] : vector<64x128xf32> to vector<64xf32>
      %26 = vector.shape_cast %25 : vector<64xf32> to vector<64x1xf32>
      %cst_18 = arith.constant 6.250000e-02 : f32
      %27 = vector.broadcast %cst_18 : f32 to vector<64x1xf32>
      %28 = arith.mulf %23, %27 : vector<64x1xf32>
      %29 = arith.mulf %23, %28 : vector<64x1xf32>
      %30 = arith.subf %26, %29 : vector<64x1xf32>
      %cst_19 = arith.constant 0.0666666701 : f32
      %31 = vector.broadcast %cst_19 : f32 to vector<64x1xf32>
      %32 = arith.mulf %30, %31 : vector<64x1xf32>
      %cst_20 = arith.constant 0.000000e+00 : f32
      %33 = vector.broadcast %cst_20 : f32 to vector<64x1xf32>
      %34 = arith.maximumf %32, %33 : vector<64x1xf32>
      %cst_21 = arith.constant 1.000000e-07 : f32
      %35 = vector.broadcast %cst_21 : f32 to vector<64x1xf32>
      %36 = arith.addf %34, %35 : vector<64x1xf32>
      %37 = math.sqrt %36 : vector<64x1xf32>
      %c0_22 = arith.constant 0 : index
      %c0_23 = arith.constant 0 : index
      %38 = vector.load %arg3[%c0_22, %c0_23] : memref<64x1xf32, #tpu.memory_space<vmem>>, vector<64x1xf32>
      tpu.vector_store %arg3[%c0_22, %c0_23], %28 {strides = array<i32>} : memref<64x1xf32, #tpu.memory_space<vmem>>, vector<64x1xf32>,
      %c0_24 = arith.constant 0 : index
      %c0_25 = arith.constant 0 : index
      %39 = vector.load %arg4[%c0_24, %c0_25] : memref<64x1xf32, #tpu.memory_space<vmem>>, vector<64x1xf32>
      tpu.vector_store %arg4[%c0_24, %c0_25], %37 {strides = array<i32>} : memref<64x1xf32, #tpu.memory_space<vmem>>, vector<64x1xf32>,
    } else {
    }
    return
  }
  func.func @transform_0(%arg0: i32, %arg1: i32) -> (i32, i32) {
    %c0_i32 = arith.constant 0 : i32
    return %arg0, %arg1 : i32, i32
  }
  func.func @transform_1(%arg0: i32, %arg1: i32) -> (i32, i32) {
    %c0_i32 = arith.constant 0 : i32
    %c0_i32_0 = arith.constant 0 : i32
    return %arg0, %c0_i32 : i32, i32
  }
  func.func @transform_2(%arg0: i32, %arg1: i32) -> (i32, i32) {
    %c0_i32 = arith.constant 0 : i32
    %c0_i32_0 = arith.constant 0 : i32
    return %arg0, %c0_i32 : i32, i32
  }
}

</mosaic_0001>

<llo_original>
// kernel: tpu_custom_call.1
$region0: #{tpu_custom_call.1}
  #allocation0 [shape = 'u32[]', space=smem, size = 0x4, offset = 0x4, fixed_abs, tag = 'smem constant byte address 0x4 - core index']
  #allocation1 [shape = 'u32[144,128]{1,0:T(1,128)}', space=vmem, size = 0x12000, scoped, tag = 'internal scratch']
  #allocation2 [shape = 'f32[64,128]{1,0:T(8,128)}', space=vmem, size = 0x8000, scoped, tag = 'scratch operand']
  #allocation3 [shape = 'f32[64,128]{1,0:T(8,128)}', space=vmem, size = 0x8000, scoped, tag = 'scratch operand']
  %s0 = inlined_call_operand.vmem [shape: f32[64,16], index: 0, kind: input, shape index: {}]
  %s1 = inlined_call_operand.vmem [shape: f32[64,1], index: 1, kind: output, shape index: {0}]
  %s2 = inlined_call_operand.vmem [shape: f32[64,1], index: 2, kind: output, shape index: {1}]
  %3 = xla_tuple %s1, %s2
  %s4 = sld [smem:[#allocation0]]
  $region30: #{tpu_custom_call.1} parent=0
    _
  %s6 = ssub.s32 1, %s4
  %s7 = scalar_select 0, %s6, %s4
  // Predicated region
  $region2: #{tpu_custom_call.1} parent=0 // pred_check
    _
  $region3: #{tpu_custom_call.1} parent=0 // pred_check_branch
    %9 = sbr.rel (0) target = $region5
  $region4: #{tpu_custom_call.1} parent=0 // pred_region
    _
  $region5: #{tpu_custom_call.1} parent=0 // pred_fallthru
    _
  %p10 = scmp.eq.s32.totalorder 0, 0
  // Predicated region
  $region6: #{tpu_custom_call.1} parent=0 // pred_check
    %p11 = pneg %p10
  $region7: #{tpu_custom_call.1} parent=0 // pred_check_branch
    %13 = sbr.rel (%p11) target = $region9
  $region8: #{tpu_custom_call.1} parent=0 // pred_region
    %14 = vst [vmem:[#allocation2] sm:$0xff] 0.0
    %15 = vst [vmem:[#allocation2 + $0x8] sm:$0xff] 0.0
    %16 = vst [vmem:[#allocation2 + $0x10] sm:$0xff] 0.0
    %17 = vst [vmem:[#allocation2 + $0x18] sm:$0xff] 0.0
    %18 = vst [vmem:[#allocation2 + $0x20] sm:$0xff] 0.0
    %19 = vst [vmem:[#allocation2 + $0x28] sm:$0xff] 0.0
    %20 = vst [vmem:[#allocation2 + $0x30] sm:$0xff] 0.0
    %21 = vst [vmem:[#allocation2 + $0x38] sm:$0xff] 0.0
    %22 = vst [vmem:[#allocation3] sm:$0xff] 0.0
    %23 = vst [vmem:[#allocation3 + $0x8] sm:$0xff] 0.0
    %24 = vst [vmem:[#allocation3 + $0x10] sm:$0xff] 0.0
    %25 = vst [vmem:[#allocation3 + $0x18] sm:$0xff] 0.0
    %26 = vst [vmem:[#allocation3 + $0x20] sm:$0xff] 0.0
    %27 = vst [vmem:[#allocation3 + $0x28] sm:$0xff] 0.0
    %28 = vst [vmem:[#allocation3 + $0x30] sm:$0xff] 0.0
    %29 = vst [vmem:[#allocation3 + $0x38] sm:$0xff] 0.0
  $region9: #{tpu_custom_call.1} parent=0 // pred_fallthru
    _
  %v30 = vld [vmem:[%s0] sm:$0xff]
  %v31 = vld [vmem:[%s0 + $0x8] sm:$0xff]
  %v32 = vld [vmem:[%s0 + $0x10] sm:$0xff]
  %v33 = vld [vmem:[%s0 + $0x18] sm:$0xff]
  %v34 = vld [vmem:[%s0 + $0x20] sm:$0xff]
  %v35 = vld [vmem:[%s0 + $0x28] sm:$0xff]
  %v36 = vld [vmem:[%s0 + $0x30] sm:$0xff]
  %v37 = vld [vmem:[%s0 + $0x38] sm:$0xff]
  %s38 = smul.u32 0, 128
  %s39 = ssub.s32 16, %s38
  %v40 = vlaneseq
  %v41 = vand.u32 %v40, 127
  %v42 = vstv %s39
  %vm43 = vcmp.lt.s32.totalorder %v41, %v42
  %v44 = vsel %vm43, %v30, 0.0
  %v45 = vsel %vm43, %v31, 0.0
  %v46 = vsel %vm43, %v32, 0.0
  %v47 = vsel %vm43, %v33, 0.0
  %v48 = vsel %vm43, %v34, 0.0
  %v49 = vsel %vm43, %v35, 0.0
  %v50 = vsel %vm43, %v36, 0.0
  %v51 = vsel %vm43, %v37, 0.0
  %v52 = vmul.f32 %v44, %v44
  %v53 = vmul.f32 %v45, %v45
  %v54 = vmul.f32 %v46, %v46
  %v55 = vmul.f32 %v47, %v47
  %v56 = vmul.f32 %v48, %v48
  %v57 = vmul.f32 %v49, %v49
  %v58 = vmul.f32 %v50, %v50
  %v59 = vmul.f32 %v51, %v51
  %v60 = vld [vmem:[#allocation2] sm:$0xff]
  %v61 = vld [vmem:[#allocation2 + $0x8] sm:$0xff]
  %v62 = vld [vmem:[#allocation2 + $0x10] sm:$0xff]
  %v63 = vld [vmem:[#allocation2 + $0x18] sm:$0xff]
  %v64 = vld [vmem:[#allocation2 + $0x20] sm:$0xff]
  %v65 = vld [vmem:[#allocation2 + $0x28] sm:$0xff]
  %v66 = vld [vmem:[#allocation2 + $0x30] sm:$0xff]
  %v67 = vld [vmem:[#allocation2 + $0x38] sm:$0xff]
  %v68 = vadd.f32 %v60, %v44
  %v69 = vadd.f32 %v61, %v45
  %v70 = vadd.f32 %v62, %v46
  %v71 = vadd.f32 %v63, %v47
  %v72 = vadd.f32 %v64, %v48
  %v73 = vadd.f32 %v65, %v49
  %v74 = vadd.f32 %v66, %v50
  %v75 = vadd.f32 %v67, %v51
  %76 = vst [vmem:[#allocation2] sm:$0xff] %v68
  %77 = vst [vmem:[#allocation2 + $0x8] sm:$0xff] %v69
  %78 = vst [vmem:[#allocation2 + $0x10] sm:$0xff] %v70
  %79 = vst [vmem:[#allocation2 + $0x18] sm:$0xff] %v71
  %80 = vst [vmem:[#allocation2 + $0x20] sm:$0xff] %v72
  %81 = vst [vmem:[#allocation2 + $0x28] sm:$0xff] %v73
  %82 = vst [vmem:[#allocation2 + $0x30] sm:$0xff] %v74
  %83 = vst [vmem:[#allocation2 + $0x38] sm:$0xff] %v75
  %v84 = vld [vmem:[#allocation3] sm:$0xff]
  %v85 = vld [vmem:[#allocation3 + $0x8] sm:$0xff]
  %v86 = vld [vmem:[#allocation3 + $0x10] sm:$0xff]
  %v87 = vld [vmem:[#allocation3 + $0x18] sm:$0xff]
  %v88 = vld [vmem:[#allocation3 + $0x20] sm:$0xff]
  %v89 = vld [vmem:[#allocation3 + $0x28] sm:$0xff]
  %v90 = vld [vmem:[#allocation3 + $0x30] sm:$0xff]
  %v91 = vld [vmem:[#allocation3 + $0x38] sm:$0xff]
  %v92 = vadd.f32 %v84, %v52
  %v93 = vadd.f32 %v85, %v53
  %v94 = vadd.f32 %v86, %v54
  %v95 = vadd.f32 %v87, %v55
  %v96 = vadd.f32 %v88, %v56
  %v97 = vadd.f32 %v89, %v57
  %v98 = vadd.f32 %v90, %v58
  %v99 = vadd.f32 %v91, %v59
  %100 = vst [vmem:[#allocation3] sm:$0xff] %v92
  %101 = vst [vmem:[#allocation3 + $0x8] sm:$0xff] %v93
  %102 = vst [vmem:[#allocation3 + $0x10] sm:$0xff] %v94
  %103 = vst [vmem:[#allocation3 + $0x18] sm:$0xff] %v95
  %104 = vst [vmem:[#allocation3 + $0x20] sm:$0xff] %v96
  %105 = vst [vmem:[#allocation3 + $0x28] sm:$0xff] %v97
  %106 = vst [vmem:[#allocation3 + $0x30] sm:$0xff] %v98
  %107 = vst [vmem:[#allocation3 + $0x38] sm:$0xff] %v99
  // Predicated region
  $region10: #{tpu_custom_call.1} parent=0 // pred_check
    %p108 = pneg %p10
  $region11: #{tpu_custom_call.1} parent=0 // pred_check_branch
    %110 = sbr.rel (%p108) target = $region13
  $region12: #{tpu_custom_call.1} parent=0 // pred_region
    %v111 = vld [vmem:[#allocation2] sm:$0xff]
    %v112 = vld [vmem:[#allocation2 + $0x8] sm:$0xff]
    %v113 = vld [vmem:[#allocation2 + $0x10] sm:$0xff]
    %v114 = vld [vmem:[#allocation2 + $0x18] sm:$0xff]
    %v115 = vld [vmem:[#allocation2 + $0x20] sm:$0xff]
    %v116 = vld [vmem:[#allocation2 + $0x28] sm:$0xff]
    %v117 = vld [vmem:[#allocation2 + $0x30] sm:$0xff]
    %v118 = vld [vmem:[#allocation2 + $0x38] sm:$0xff]
    %119 = vadd.xlane.f32.xlu0 %v111
    %v120 = vpop.xlane.xlu0 %119
    %121 = vadd.xlane.f32.xlu0 %v112
    %v122 = vpop.xlane.xlu0 %121
    %123 = vadd.xlane.f32.xlu0 %v113
    %v124 = vpop.xlane.xlu0 %123
    %125 = vadd.xlane.f32.xlu0 %v114
    %v126 = vpop.xlane.xlu0 %125
    %127 = vadd.xlane.f32.xlu0 %v115
    %v128 = vpop.xlane.xlu0 %127
    %129 = vadd.xlane.f32.xlu0 %v116
    %v130 = vpop.xlane.xlu0 %129
    %131 = vadd.xlane.f32.xlu0 %v117
    %v132 = vpop.xlane.xlu0 %131
    %133 = vadd.xlane.f32.xlu0 %v118
    %v134 = vpop.xlane.xlu0 %133
    %v135 = vld [vmem:[#allocation3] sm:$0xff]
    %v136 = vld [vmem:[#allocation3 + $0x8] sm:$0xff]
    %v137 = vld [vmem:[#allocation3 + $0x10] sm:$0xff]
    %v138 = vld [vmem:[#allocation3 + $0x18] sm:$0xff]
    %v139 = vld [vmem:[#allocation3 + $0x20] sm:$0xff]
    %v140 = vld [vmem:[#allocation3 + $0x28] sm:$0xff]
    %v141 = vld [vmem:[#allocation3 + $0x30] sm:$0xff]
    %v142 = vld [vmem:[#allocation3 + $0x38] sm:$0xff]
    %143 = vadd.xlane.f32.xlu0 %v135
    %v144 = vpop.xlane.xlu0 %143
    %145 = vadd.xlane.f32.xlu0 %v136
    %v146 = vpop.xlane.xlu0 %145
    %147 = vadd.xlane.f32.xlu0 %v137
    %v148 = vpop.xlane.xlu0 %147
    %149 = vadd.xlane.f32.xlu0 %v138
    %v150 = vpop.xlane.xlu0 %149
    %151 = vadd.xlane.f32.xlu0 %v139
    %v152 = vpop.xlane.xlu0 %151
    %153 = vadd.xlane.f32.xlu0 %v140
    %v154 = vpop.xlane.xlu0 %153
    %155 = vadd.xlane.f32.xlu0 %v141
    %v156 = vpop.xlane.xlu0 %155
    %157 = vadd.xlane.f32.xlu0 %v142
    %v158 = vpop.xlane.xlu0 %157
    %v159 = vmul.f32 %v120, 0.0625
    %v160 = vmul.f32 %v122, 0.0625
    %v161 = vmul.f32 %v124, 0.0625
    %v162 = vmul.f32 %v126, 0.0625
    %v163 = vmul.f32 %v128, 0.0625
    %v164 = vmul.f32 %v130, 0.0625
    %v165 = vmul.f32 %v132, 0.0625
    %v166 = vmul.f32 %v134, 0.0625
    %v167 = vmul.f32 %v120, %v159
    %v168 = vmul.f32 %v122, %v160
    %v169 = vmul.f32 %v124, %v161
    %v170 = vmul.f32 %v126, %v162
    %v171 = vmul.f32 %v128, %v163
    %v172 = vmul.f32 %v130, %v164
    %v173 = vmul.f32 %v132, %v165
    %v174 = vmul.f32 %v134, %v166
    %v175 = vsub.f32 %v144, %v167
    %v176 = vsub.f32 %v146, %v168
    %v177 = vsub.f32 %v148, %v169
    %v178 = vsub.f32 %v150, %v170
    %v179 = vsub.f32 %v152, %v171
    %v180 = vsub.f32 %v154, %v172
    %v181 = vsub.f32 %v156, %v173
    %v182 = vsub.f32 %v158, %v174
    %v183 = vmul.f32 %v175, 0.06666667
    %v184 = vmul.f32 %v176, 0.06666667
    %v185 = vmul.f32 %v177, 0.06666667
    %v186 = vmul.f32 %v178, 0.06666667
    %v187 = vmul.f32 %v179, 0.06666667
    %v188 = vmul.f32 %v180, 0.06666667
    %v189 = vmul.f32 %v181, 0.06666667
    %v190 = vmul.f32 %v182, 0.06666667
    %v191 = vmax.f32 %v183, 0.0
    %v192 = vmax.f32 %v184, 0.0
    %v193 = vmax.f32 %v185, 0.0
    %v194 = vmax.f32 %v186, 0.0
    %v195 = vmax.f32 %v187, 0.0
    %v196 = vmax.f32 %v188, 0.0
    %v197 = vmax.f32 %v189, 0.0
    %v198 = vmax.f32 %v190, 0.0
    %v199 = vadd.f32 %v191, 1e-07
    %v200 = vadd.f32 %v192, 1e-07
    %v201 = vadd.f32 %v193, 1e-07
    %v202 = vadd.f32 %v194, 1e-07
    %v203 = vadd.f32 %v195, 1e-07
    %v204 = vadd.f32 %v196, 1e-07
    %v205 = vadd.f32 %v197, 1e-07
    %v206 = vadd.f32 %v198, 1e-07
    %v207 = vrsqrt.pop %v199
    %v208 = vmul.f32 %v199, %v207
    %vm209 = vcmp.eq.f32.partialorder %v199, inf
    %v210 = vsel %vm209, %v199, %v208
    %vm211 = vcmp.eq.f32.partialorder %v199, 0.0
    %v212 = vand.u32 %v199, 2147483648
    %v213 = vsel %vm211, %v212, %v210
    %v214 = vrsqrt.pop %v200
    %v215 = vmul.f32 %v200, %v214
    %vm216 = vcmp.eq.f32.partialorder %v200, inf
    %v217 = vsel %vm216, %v200, %v215
    %vm218 = vcmp.eq.f32.partialorder %v200, 0.0
    %v219 = vand.u32 %v200, 2147483648
    %v220 = vsel %vm218, %v219, %v217
    %v221 = vrsqrt.pop %v201
    %v222 = vmul.f32 %v201, %v221
    %vm223 = vcmp.eq.f32.partialorder %v201, inf
    %v224 = vsel %vm223, %v201, %v222
    %vm225 = vcmp.eq.f32.partialorder %v201, 0.0
    %v226 = vand.u32 %v201, 2147483648
    %v227 = vsel %vm225, %v226, %v224
    %v228 = vrsqrt.pop %v202
    %v229 = vmul.f32 %v202, %v228
    %vm230 = vcmp.eq.f32.partialorder %v202, inf
    %v231 = vsel %vm230, %v202, %v229
    %vm232 = vcmp.eq.f32.partialorder %v202, 0.0
    %v233 = vand.u32 %v202, 2147483648
    %v234 = vsel %vm232, %v233, %v231
    %v235 = vrsqrt.pop %v203
    %v236 = vmul.f32 %v203, %v235
    %vm237 = vcmp.eq.f32.partialorder %v203, inf
    %v238 = vsel %vm237, %v203, %v236
    %vm239 = vcmp.eq.f32.partialorder %v203, 0.0
    %v240 = vand.u32 %v203, 2147483648
    %v241 = vsel %vm239, %v240, %v238
    %v242 = vrsqrt.pop %v204
    %v243 = vmul.f32 %v204, %v242
    %vm244 = vcmp.eq.f32.partialorder %v204, inf
    %v245 = vsel %vm244, %v204, %v243
    %vm246 = vcmp.eq.f32.partialorder %v204, 0.0
    %v247 = vand.u32 %v204, 2147483648
    %v248 = vsel %vm246, %v247, %v245
    %v249 = vrsqrt.pop %v205
    %v250 = vmul.f32 %v205, %v249
    %vm251 = vcmp.eq.f32.partialorder %v205, inf
    %v252 = vsel %vm251, %v205, %v250
    %vm253 = vcmp.eq.f32.partialorder %v205, 0.0
    %v254 = vand.u32 %v205, 2147483648
    %v255 = vsel %vm253, %v254, %v252
    %v256 = vrsqrt.pop %v206
    %v257 = vmul.f32 %v206, %v256
    %vm258 = vcmp.eq.f32.partialorder %v206, inf
    %v259 = vsel %vm258, %v206, %v257
    %vm260 = vcmp.eq.f32.partialorder %v206, 0.0
    %v261 = vand.u32 %v206, 2147483648
    %v262 = vsel %vm260, %v261, %v259
    %vm263 = vcmask 7168
    %264 = vst.msk [vmem:[%s1] sm:$0xff] %vm263, %v159
    %265 = vst.msk [vmem:[%s1 + $0x8] sm:$0xff] %vm263, %v160
    %266 = vst.msk [vmem:[%s1 + $0x10] sm:$0xff] %vm263, %v161
    %267 = vst.msk [vmem:[%s1 + $0x18] sm:$0xff] %vm263, %v162
    %268 = vst.msk [vmem:[%s1 + $0x20] sm:$0xff] %vm263, %v163
    %269 = vst.msk [vmem:[%s1 + $0x28] sm:$0xff] %vm263, %v164
    %270 = vst.msk [vmem:[%s1 + $0x30] sm:$0xff] %vm263, %v165
    %271 = vst.msk [vmem:[%s1 + $0x38] sm:$0xff] %vm263, %v166
    %272 = vst.msk [vmem:[%s2] sm:$0xff] %vm263, %v213
    %273 = vst.msk [vmem:[%s2 + $0x8] sm:$0xff] %vm263, %v220
    %274 = vst.msk [vmem:[%s2 + $0x10] sm:$0xff] %vm263, %v227
    %275 = vst.msk [vmem:[%s2 + $0x18] sm:$0xff] %vm263, %v234
    %276 = vst.msk [vmem:[%s2 + $0x20] sm:$0xff] %vm263, %v241
    %277 = vst.msk [vmem:[%s2 + $0x28] sm:$0xff] %vm263, %v248
    %278 = vst.msk [vmem:[%s2 + $0x30] sm:$0xff] %vm263, %v255
    %279 = vst.msk [vmem:[%s2 + $0x38] sm:$0xff] %vm263, %v262
  $region13: #{tpu_custom_call.1} parent=0 // pred_fallthru
    _
  // Predicated region
  $region14: #{tpu_custom_call.1} parent=0 // pred_check
    _
  $region15: #{tpu_custom_call.1} parent=0 // pred_check_branch
    %281 = sbr.rel (0) target = $region17
  $region16: #{tpu_custom_call.1} parent=0 // pred_region
    _
  $region17: #{tpu_custom_call.1} parent=0 // pred_fallthru
    _
  // Predicated region
  $region18: #{tpu_custom_call.1} parent=0 // pred_check
    _
  $region19: #{tpu_custom_call.1} parent=0 // pred_check_branch
    %283 = sbr.rel (0) target = $region21
  $region20: #{tpu_custom_call.1} parent=0 // pred_region
    _
  $region21: #{tpu_custom_call.1} parent=0 // pred_fallthru
    _
  // Predicated region
  $region22: #{tpu_custom_call.1} parent=0 // pred_check
    _
  $region23: #{tpu_custom_call.1} parent=0 // pred_check_branch
    %285 = sbr.rel (0) target = $region25
  $region24: #{tpu_custom_call.1} parent=0 // pred_region
    _
  $region25: #{tpu_custom_call.1} parent=0 // pred_fallthru
    _
  // Predicated region
  $region26: #{tpu_custom_call.1} parent=0 // pred_check
    _
  $region27: #{tpu_custom_call.1} parent=0 // pred_check_branch
    %287 = sbr.rel (0) target = $region29
  $region28: #{tpu_custom_call.1} parent=0 // pred_region
    _
  $region29: #{tpu_custom_call.1} parent=0 // pred_fallthru
    _

</llo_original>
